<compile_context>
chip_gen: v6e
topology: v6e:2x2x1
jax: 0.10.0
libtpu: 0.0.40
codegen_flags: <defaults>
</compile_context>

<pallas_src>
import jax
import jax.numpy as jnp
import numpy as np
from jax.experimental import pallas as pl
from jax.experimental.pallas import tpu as pltpu


def _masked_embed_kernel(x_ref, colw_ref, m_ref, peb_ref, o_ref):
    # x_ref    : VMEM (TB, T, D)   inputs (padded columns may hold garbage; colw zeroes them)
    # colw_ref : VMEM (TB, 1, D)   per-sample mean weights: 1/n on real columns, 0 on padding
    # m_ref    : VMEM (T, T*E)     block-diagonal expansion of the Linear weight (M[t, t*E+e] = w[e])
    # peb_ref  : VMEM (1, T*E)     positional encoding + bias, flattened lane-dense
    # o_ref    : VMEM (TB, T*E)
    feat = jnp.sum(x_ref[...] * colw_ref[...], axis=-1)          # (TB, T): masked per-token mean
    o_ref[...] = (
        jnp.dot(
            feat,
            m_ref[...],
            preferred_element_type=jnp.float32,
            precision=jax.lax.Precision.HIGHEST,
        )
        + peb_ref[...]
    )


def _pick_tb(B, T, D, E, target_bytes=1 << 20):
    """Pick the per-step batch tile.

    Targets ~1 MiB of in+out block bytes (fits comfortably in the default scoped VMEM on
    v5e/v6e/v7x even double-buffered), keeps the output block's second-minor dim a multiple
    of 8, and keeps >=2 grid steps when possible so the parallel grid axis can shard across
    TensorCores (v7x megacore)."""
    if B <= 8:
        return B  # single full block; block dims equal to array dims satisfy the tiling rules
    per_sample = (T * D + T * E) * 4  # f32 input + output bytes per sample
    tb = max(8, min(B // 2, target_bytes // per_sample))
    tb = max(8, (tb // 8) * 8)
    return tb


def masked_general_input_processor(x, asset_dims, w, b, pe, *, tb=None):
    """
    x          : (B, T, D) float32
    asset_dims : (B,) int32   (number of real assets per sample; n_real = asset_dims + 1)
    w          : (E,) float32 (Linear(1, E) weight, column 0)
    b          : (E,) float32 (Linear(1, E) bias)
    pe         : (T, E) float32 (sinusoidal positional encoding)
    returns    : (B, T, E) float32
    """
    B, T, D = x.shape
    E = w.shape[0]
    TE = T * E

    # --- host-side constant folding (trivial XLA ops, done once per call) ---
    n = jnp.clip(asset_dims.astype(jnp.int32) + 1, 1, D).astype(jnp.float32)       # clamp to [1, D]
    col = jnp.arange(D, dtype=jnp.float32)[None, :]                                  # (1, D)
    colw = jnp.where(col < n[:, None], 1.0 / n[:, None], 0.0).reshape(B, 1, D)       # masked-mean weights
    m = (jnp.eye(T, dtype=jnp.float32)[:, :, None] * w[None, None, :]).reshape(T, TE)
    peb = (pe.astype(jnp.float32) + b[None, :].astype(jnp.float32)).reshape(1, TE)   # pe + bias, flattened

    if tb is None:
        tb = _pick_tb(B, T, D, E)
    grid = (pl.cdiv(B, tb),)

    out_flat = pl.pallas_call(
        _masked_embed_kernel,
        out_shape=jax.ShapeDtypeStruct((B, TE), jnp.float32),
        grid_spec=pl.GridSpec(
            grid=grid,
            in_specs=[
                pl.BlockSpec((tb, T, D), lambda i: (i, 0, 0)),   # x
                pl.BlockSpec((tb, 1, D), lambda i: (i, 0, 0)),   # colw
                pl.BlockSpec((T, TE), lambda i: (0, 0)),         # expansion matrix (resident)
                pl.BlockSpec((1, TE), lambda i: (0, 0)),         # pe + bias (resident)
            ],
            out_specs=pl.BlockSpec((tb, TE), lambda i: (i, 0)),  # lane-dense output block
        ),
        compiler_params=pltpu.CompilerParams(
            dimension_semantics=("parallel",),
        ),
    )(x, colw, m, peb)

    return out_flat.reshape(B, T, E)  # free: same row-major layout


def make_positional_encoding(seq_len, embed_dim):
    """Standard sinusoidal positional encoding, batch-first: shape (seq_len, embed_dim)."""
    position = jnp.arange(seq_len, dtype=jnp.float32)[:, None]             # (T, 1)
    div_term = jnp.exp(
        jnp.arange(0, embed_dim, 2, dtype=jnp.float32) * (-jnp.log(10000.0) / embed_dim)
    )                                                                       # (E/2,)
    pe = jnp.zeros((seq_len, embed_dim), dtype=jnp.float32)
    pe = pe.at[:, 0::2].set(jnp.sin(position * div_term))
    pe = pe.at[:, 1::2].set(jnp.cos(position * div_term))
    return pe


def reference(x, asset_dims, w, b, pe):
    """NumPy reference mirroring the PyTorch forward loop."""
    B, T, D = x.shape
    E = w.shape[0]
    out = np.zeros((B, T, E), dtype=np.float32)
    x_np = np.asarray(x)
    ad_np = np.asarray(asset_dims)
    w_np = np.asarray(w)
    b_np = np.asarray(b)
    for i in range(B):
        n = int(ad_np[i]) + 1
        real = x_np[i, :, :n].reshape(-1, 1)                # (T*n, 1)
        emb = real * w_np[None, :] + b_np[None, :]          # Linear(1, E)
        emb = emb.reshape(T, n, E).mean(axis=1)             # mean over real features
        out[i] = emb
    out = out + np.asarray(pe)[None, :, :]
    return out


if __name__ == "__main__":
    # SMALL shapes consistent with the module: max assets + maturity = 4, seq_len = 8, embed = 32.
    B, T, D, E = 16, 8, 4, 32

    key = jax.random.PRNGKey(0)
    kx, kw, kb = jax.random.split(key, 3)

    x = jax.random.normal(kx, (B, T, D), dtype=jnp.float32)
    # 1..3 real assets per sample  ->  n_real = asset_dims + 1 in [2, 4] <= D
    asset_dims = (jnp.arange(B, dtype=jnp.int32) % 3) + 1
    # fill padded columns with finite garbage to demonstrate they are ignored completely
    col_ids = jnp.arange(D)[None, None, :]
    x = jnp.where(col_ids < (asset_dims[:, None, None] + 1), x, 777.0)

    # PyTorch Linear(1, E) default init is U(-1, 1) since fan_in = 1.
    w = jax.random.uniform(kw, (E,), minval=-1.0, maxval=1.0, dtype=jnp.float32)
    b = jax.random.uniform(kb, (E,), minval=-1.0, maxval=1.0, dtype=jnp.float32)

    pe = make_positional_encoding(T, E)

    out = masked_general_input_processor(x, asset_dims, w, b, pe)
    out = jax.block_until_ready(out)

    ref = reference(x, asset_dims, w, b, pe)
    np.testing.assert_allclose(np.asarray(out), ref, rtol=1e-5, atol=1e-5)

    print("KERNEL_OK")
</pallas_src>

<mosaic_0001>
module attributes {stable_mosaic.version = 11 : i64} {
  func.func @_masked_embed_kernel(%arg0: i32, %arg1: memref<8x8x4xf32, #tpu.memory_space<vmem>>, %arg2: memref<8x1x4xf32, #tpu.memory_space<vmem>>, %arg3: memref<8x256xf32, #tpu.memory_space<vmem>>, %arg4: memref<1x256xf32, #tpu.memory_space<vmem>>, %arg5: memref<8x256xf32, #tpu.memory_space<vmem>>) attributes {dimension_semantics = [#tpu.dimension_semantics<parallel>], iteration_bounds = array<i64: 2>, scalar_prefetch = 0 : i64, scratch_operands = 0 : i64, tpu.core_type = #tpu.core_type<tc>, window_params = [{transform_indices = @transform_0, window_bounds = array<i64: 8, 8, 4>}, {transform_indices = @transform_1, window_bounds = array<i64: 8, 1, 4>}, {pipeline_mode = #tpu.pipeline_mode<synchronous>, transform_indices = @transform_2, window_bounds = array<i64: 8, 256>}, {pipeline_mode = #tpu.pipeline_mode<synchronous>, transform_indices = @transform_3, window_bounds = array<i64: 1, 256>}, {transform_indices = @transform_4, window_bounds = array<i64: 8, 256>}]} {
    %c0 = arith.constant 0 : index
    %c0_0 = arith.constant 0 : index
    %c0_1 = arith.constant 0 : index
    %0 = vector.load %arg1[%c0, %c0_0, %c0_1] : memref<8x8x4xf32, #tpu.memory_space<vmem>>, vector<8x8x4xf32>
    %c0_2 = arith.constant 0 : index
    %c0_3 = arith.constant 0 : index
    %c0_4 = arith.constant 0 : index
    %1 = vector.load %arg2[%c0_2, %c0_3, %c0_4] : memref<8x1x4xf32, #tpu.memory_space<vmem>>, vector<8x1x4xf32>
    %2 = vector.broadcast %1 : vector<8x1x4xf32> to vector<8x8x4xf32>
    %3 = arith.mulf %0, %2 : vector<8x8x4xf32>
    %cst = arith.constant dense<0.000000e+00> : vector<8x8xf32>
    %4 = vector.multi_reduction <add>, %3, %cst [2] : vector<8x8x4xf32> to vector<8x8xf32>
    %c0_5 = arith.constant 0 : index
    %c0_6 = arith.constant 0 : index
    %5 = vector.load %arg3[%c0_5, %c0_6] : memref<8x256xf32, #tpu.memory_space<vmem>>, vector<8x256xf32>
    %cst_7 = arith.constant dense<0.000000e+00> : vector<8x256xf32>
    %6 = tpu.matmul %4, %5, %cst_7 {dimension_numbers = #tpu.dot_dimension_numbers<[1], [0], [0], [1], [0, 0, 1, 1], [], []>, precision = #tpu.contract_precision<fp32>} : vector<8x8xf32>, vector<8x256xf32>, vector<8x256xf32> -> vector<8x256xf32>
    %c0_8 = arith.constant 0 : index
    %c0_9 = arith.constant 0 : index
    %7 = vector.load %arg4[%c0_8, %c0_9] : memref<1x256xf32, #tpu.memory_space<vmem>>, vector<1x256xf32>
    %8 = vector.broadcast %7 : vector<1x256xf32> to vector<8x256xf32>
    %9 = arith.addf %6, %8 : vector<8x256xf32>
    %c0_10 = arith.constant 0 : index
    %c0_11 = arith.constant 0 : index
    %10 = vector.load %arg5[%c0_10, %c0_11] : memref<8x256xf32, #tpu.memory_space<vmem>>, vector<8x256xf32>
    tpu.vector_store %arg5[%c0_10, %c0_11], %9 {strides = array<i32>} : memref<8x256xf32, #tpu.memory_space<vmem>>, vector<8x256xf32>,
    return
  }
  func.func @transform_0(%arg0: i32) -> (i32, i32, i32) {
    %c0_i32 = arith.constant 0 : i32
    %c0_i32_0 = arith.constant 0 : i32
    %c0_i32_1 = arith.constant 0 : i32
    return %arg0, %c0_i32, %c0_i32_0 : i32, i32, i32
  }
  func.func @transform_1(%arg0: i32) -> (i32, i32, i32) {
    %c0_i32 = arith.constant 0 : i32
    %c0_i32_0 = arith.constant 0 : i32
    %c0_i32_1 = arith.constant 0 : i32
    return %arg0, %c0_i32, %c0_i32_0 : i32, i32, i32
  }
  func.func @transform_2(%arg0: i32) -> (i32, i32) {
    %c0_i32 = arith.constant 0 : i32
    %c0_i32_0 = arith.constant 0 : i32
    %c0_i32_1 = arith.constant 0 : i32
    return %c0_i32, %c0_i32_0 : i32, i32
  }
  func.func @transform_3(%arg0: i32) -> (i32, i32) {
    %c0_i32 = arith.constant 0 : i32
    %c0_i32_0 = arith.constant 0 : i32
    %c0_i32_1 = arith.constant 0 : i32
    return %c0_i32, %c0_i32_0 : i32, i32
  }
  func.func @transform_4(%arg0: i32) -> (i32, i32) {
    %c0_i32 = arith.constant 0 : i32
    %c0_i32_0 = arith.constant 0 : i32
    return %arg0, %c0_i32 : i32, i32
  }
}

</mosaic_0001>

<llo_original>
// kernel: tpu_custom_call.1
$region0: #{tpu_custom_call.1}
  #allocation0 [shape = 'u32[]', space=smem, size = 0x4, offset = 0x4, fixed_abs, tag = 'smem constant byte address 0x4 - core index']
  #allocation1 [shape = 'u32[144,128]{1,0:T(1,128)}', space=vmem, size = 0x12000, scoped, tag = 'internal scratch']
  %s0 = inlined_call_operand.vmem [shape: f32[16,8,4], index: 0, kind: input, shape index: {}]
  %s1 = inlined_call_operand.vmem [shape: f32[16,1,4], index: 1, kind: input, shape index: {}]
  %s2 = inlined_call_operand.vmem [shape: f32[8,256], index: 2, kind: input, shape index: {}]
  %s3 = inlined_call_operand.vmem [shape: f32[1,256], index: 3, kind: input, shape index: {}]
  %s4 = inlined_call_operand.hbm [shape: f32[16,256], index: 4, kind: output, shape index: {}]
  %s5 = sld [smem:[#allocation0]]
  $region49: #{tpu_custom_call.1} parent=0
    _
  %s7 = ssub.s32 1, %s5
  %s8 = scalar_select 0, %s7, %s5
  $region1: #{tpu_custom_call.1} parent=0
    #allocation2 [shape = 'u8[16384]{0}', space=vmem, size = 0x4000, scoped, tag = 'output window, operand 0']
    #allocation3 [shape = 's32[2]{0}', space=sflag, size = 0x8, scoped, tag = 'scoped memory for tpu_custom_call.1']
    %9 = vsyncpa [#allocation3], 0
    %s10 = scalar_lea.sflag [#allocation3], 1
    %11 = vsyncpa %s10, 0
    loop: start=0, step=1, limit=4
    $region2: #{tpu_custom_call.1} parent=1 // loop_pre_header
      _
    $region3: #{tpu_custom_call.1} parent=1 // loop_header
      %s13 = sphi 0, %s17
      %p14 = scmp.ge.s32.totalorder %s13, 4
      %s23 = sphi 0, %s25
      %s26 = sphi 0, %s23
      %s27 = sphi 0, %s26
      %s43 = sphi 0, %s27
      %s49 = sphi 0, %s51
      %s52 = sphi 0, %s49
      %s53 = sphi 0, %s52
      %s69 = sphi 0, %s53
      %s73 = sphi 0, %s73
      %s75 = sphi 0, %s73
      %s76 = sphi 0, %s75
      %s90 = sphi 0, %s76
      %s94 = sphi 0, %s94
      %s96 = sphi 0, %s94
      %s97 = sphi 0, %s96
      %s111 = sphi 0, %s97
      %s117 = sphi 0, %s119
      %s120 = sphi 0, %s117
      %s121 = sphi 0, %s120
      %s137 = sphi 0, %s121
    $region4: #{tpu_custom_call.1} parent=1 // loop_header_branch
      %16 = sbr.rel (%p14) target = $region8
    $region5: #{tpu_custom_call.1} parent=1 // loop_body
      %s18 = ssub.s32 %s13, 1
      %s19 = ssub.s32 %s13, 2
      %s20 = sadd.s32 %s13, 1
      %s21 = ssub.s32 %s13, %s20
      %p22 = scmp.eq.s32.totalorder %s21, 0
      %s24 = sadd.s32 %s23, 1
      %s25 = scalar_select %p22, %s23, %s24
      %p28 = pneg %p22
      %p29 = scmp.eq.s32.totalorder %s13, 1
      %p30 = por %p28, %p29
      %p31 = scmp.ne.s32.totalorder %s23, %s26
      %p32 = scmp.eq.s32.totalorder %s13, 0
      %p33 = por %p31, %p32
      %p34 = scmp.ne.s32.totalorder %s23, %s26
      %p35 = scmp.eq.s32.totalorder %s18, 1
      %p36 = por %p34, %p35
      %p37 = scmp.ne.s32.totalorder %s26, %s27
      %p38 = scmp.eq.s32.totalorder %s18, 0
      %p39 = por %p37, %p38
      %p40 = scmp.ne.s32.totalorder %s26, %s27
      %p41 = scmp.eq.s32.totalorder %s19, 1
      %p42 = por %p40, %p41
      %p44 = scmp.ne.s32.totalorder %s27, %s43
      %p45 = scmp.eq.s32.totalorder %s19, 0
      %p46 = por %p44, %p45
      %s47 = ssub.s32 %s13, %s20
      %p48 = scmp.eq.s32.totalorder %s47, 0
      %s50 = sadd.s32 %s49, 1
      %s51 = scalar_select %p48, %s49, %s50
      %p54 = pneg %p48
      %p55 = scmp.eq.s32.totalorder %s13, 1
      %p56 = por %p54, %p55
      %p57 = scmp.ne.s32.totalorder %s49, %s52
      %p58 = scmp.eq.s32.totalorder %s13, 0
      %p59 = por %p57, %p58
      %p60 = scmp.ne.s32.totalorder %s49, %s52
      %p61 = scmp.eq.s32.totalorder %s18, 1
      %p62 = por %p60, %p61
      %p63 = scmp.ne.s32.totalorder %s52, %s53
      %p64 = scmp.eq.s32.totalorder %s18, 0
      %p65 = por %p63, %p64
      %p66 = scmp.ne.s32.totalorder %s52, %s53
      %p67 = scmp.eq.s32.totalorder %s19, 1
      %p68 = por %p66, %p67
      %p70 = scmp.ne.s32.totalorder %s53, %s69
      %p71 = scmp.eq.s32.totalorder %s19, 0
      %p72 = por %p70, %p71
      %s74 = sadd.s32 %s73, 1
      %p77 = scmp.eq.s32.totalorder %s13, 1
      %p78 = scmp.ne.s32.totalorder %s73, %s75
      %p79 = scmp.eq.s32.totalorder %s13, 0
      %p80 = por %p78, %p79
      %p81 = scmp.ne.s32.totalorder %s73, %s75
      %p82 = scmp.eq.s32.totalorder %s18, 1
      %p83 = por %p81, %p82
      %p84 = scmp.ne.s32.totalorder %s75, %s76
      %p85 = scmp.eq.s32.totalorder %s18, 0
      %p86 = por %p84, %p85
      %p87 = scmp.ne.s32.totalorder %s75, %s76
      %p88 = scmp.eq.s32.totalorder %s19, 1
      %p89 = por %p87, %p88
      %p91 = scmp.ne.s32.totalorder %s76, %s90
      %p92 = scmp.eq.s32.totalorder %s19, 0
      %p93 = por %p91, %p92
      %s95 = sadd.s32 %s94, 1
      %p98 = scmp.eq.s32.totalorder %s13, 1
      %p99 = scmp.ne.s32.totalorder %s94, %s96
      %p100 = scmp.eq.s32.totalorder %s13, 0
      %p101 = por %p99, %p100
      %p102 = scmp.ne.s32.totalorder %s94, %s96
      %p103 = scmp.eq.s32.totalorder %s18, 1
      %p104 = por %p102, %p103
      %p105 = scmp.ne.s32.totalorder %s96, %s97
      %p106 = scmp.eq.s32.totalorder %s18, 0
      %p107 = por %p105, %p106
      %p108 = scmp.ne.s32.totalorder %s96, %s97
      %p109 = scmp.eq.s32.totalorder %s19, 1
      %p110 = por %p108, %p109
      %p112 = scmp.ne.s32.totalorder %s97, %s111
      %p113 = scmp.eq.s32.totalorder %s19, 0
      %p114 = por %p112, %p113
      %s115 = ssub.s32 %s13, %s20
      %p116 = scmp.eq.s32.totalorder %s115, 0
      %s118 = sadd.s32 %s117, 1
      %s119 = scalar_select %p116, %s117, %s118
      %p122 = pneg %p116
      %p123 = scmp.eq.s32.totalorder %s13, 1
      %p124 = por %p122, %p123
      %p125 = scmp.ne.s32.totalorder %s117, %s120
      %p126 = scmp.eq.s32.totalorder %s13, 0
      %p127 = por %p125, %p126
      %p128 = scmp.ne.s32.totalorder %s117, %s120
      %p129 = scmp.eq.s32.totalorder %s18, 1
      %p130 = por %p128, %p129
      %p131 = scmp.ne.s32.totalorder %s120, %s121
      %p132 = scmp.eq.s32.totalorder %s18, 0
      %p133 = por %p131, %p132
      %p134 = scmp.ne.s32.totalorder %s120, %s121
      %p135 = scmp.eq.s32.totalorder %s19, 1
      %p136 = por %p134, %p135
      %p138 = scmp.ne.s32.totalorder %s121, %s137
      %p139 = scmp.eq.s32.totalorder %s19, 0
      %p140 = por %p138, %p139
      %p141 = scmp.le.s32.totalorder 1, %s13
      %p142 = scmp.lt.s32.totalorder %s13, 3
      %p143 = pnand %p141, %p142
      %p144 = pneg %p143
      // Predicated region
      $region9: #{tpu_custom_call.1} parent=5 // pred_check
        _
      $region10: #{tpu_custom_call.1} parent=5 // pred_check_branch
        %146 = sbr.rel (%p143) target = $region12
      $region11: #{tpu_custom_call.1} parent=5 // pred_region
        %s147 = ssub.s32 %s13, 1
        // Predicated region
        $region13: #{tpu_custom_call.1} parent=11 // pred_check
          %p148 = pneg %p86
        $region14: #{tpu_custom_call.1} parent=11 // pred_check_branch
          %150 = sbr.rel (%p148) target = $region16
        $region15: #{tpu_custom_call.1} parent=11 // pred_region
          _
        $region16: #{tpu_custom_call.1} parent=11 // pred_fallthru
          _
        // Predicated region
        $region17: #{tpu_custom_call.1} parent=11 // pred_check
          %p151 = pneg %p107
        $region18: #{tpu_custom_call.1} parent=11 // pred_check_branch
          %153 = sbr.rel (%p151) target = $region20
        $region19: #{tpu_custom_call.1} parent=11 // pred_region
          _
        $region20: #{tpu_custom_call.1} parent=11 // pred_fallthru
          _
      $region12: #{tpu_custom_call.1} parent=5 // pred_fallthru
        _
      %p154 = scmp.lt.s32.totalorder %s13, 2
      // Predicated region
      $region21: #{tpu_custom_call.1} parent=5 // pred_check
        %p155 = pneg %p154
      $region22: #{tpu_custom_call.1} parent=5 // pred_check_branch
        %157 = sbr.rel (%p155) target = $region24
      $region23: #{tpu_custom_call.1} parent=5 // pred_region
        // Predicated region
        $region25: #{tpu_custom_call.1} parent=23 // pred_check
          %p158 = pneg %p33
        $region26: #{tpu_custom_call.1} parent=23 // pred_check_branch
          %160 = sbr.rel (%p158) target = $region28
        $region27: #{tpu_custom_call.1} parent=23 // pred_region
          %s161 = smul.u32 8, %s13
          %p162 = scmp.lt.s32.totalorder %s161, 15
          %s163 = scalar_select %p162, %s161, 15
          %s164 = smul.addr %s163, 8
          %s165 = scalar_lea.vmem %s0, %s164
          %s166 = smul.u32 8, %s13
        $region28: #{tpu_custom_call.1} parent=23 // pred_fallthru
          _
        // Predicated region
        $region29: #{tpu_custom_call.1} parent=23 // pred_check
          %p167 = pneg %p59
        $region30: #{tpu_custom_call.1} parent=23 // pred_check_branch
          %169 = sbr.rel (%p167) target = $region32
        $region31: #{tpu_custom_call.1} parent=23 // pred_region
          %s170 = smul.u32 8, %s13
          %p171 = scmp.lt.s32.totalorder %s170, 15
          %s172 = scalar_select %p171, %s170, 15
          %s173 = scalar_lea.vmem %s1, %s172
          %s174 = smul.u32 8, %s13
        $region32: #{tpu_custom_call.1} parent=23 // pred_fallthru
          _
      $region24: #{tpu_custom_call.1} parent=5 // pred_fallthru
        _
      %p175 = scmp.le.s32.totalorder 1, %s13
      %p176 = scmp.lt.s32.totalorder %s13, 3
      %p177 = pnand %p175, %p176
      %p178 = pneg %p177
      // Predicated region
      $region33: #{tpu_custom_call.1} parent=5 // pred_check
        _
      $region34: #{tpu_custom_call.1} parent=5 // pred_check_branch
        %180 = sbr.rel (%p177) target = $region36
      $region35: #{tpu_custom_call.1} parent=5 // pred_region
        %s181 = ssub.s32 %s13, 1
        %s182 = smul.u32 8, %s18
        %p183 = scmp.lt.s32.totalorder %s182, 15
        %s184 = scalar_select %p183, %s182, 15
        %s185 = smul.addr %s184, 8
        %s186 = scalar_lea.vmem %s0, %s185
        %p187 = pneg %p39
        %p188 = pneg %p36
        %s189 = smul.u32 8, %s18
        %p190 = scmp.lt.s32.totalorder %s189, 15
        %s191 = scalar_select %p190, %s189, 15
        %s192 = scalar_lea.vmem %s1, %s191
        %p193 = pneg %p65
        %p194 = pneg %p62
        %p195 = pneg %p86
        %p196 = pneg %p83
        %p197 = pneg %p107
        %p198 = pneg %p104
        %p199 = pneg %p133
        %p200 = pneg %p130
        %s201 = sand.u32 %s120, 1
        %s202 = scalar_lea.sflag [#allocation3], %s201
        %s203 = sand.u32 %s120, 1
        %s204 = smul.addr %s203, 16
        %s205 = scalar_lea.vmem [#allocation2], %s204
        %s206 = smul.u32 8, %s18
        %p207 = scmp.lt.s32.totalorder %s206, 15
        %s208 = scalar_select %p207, %s206, 15
        %s209 = smul.addr %s208, 8
        %s210 = scalar_lea.vmem %s0, %s209
        %s211 = smul.u32 8, %s18
        %s212 = smul.u32 8, %s18
        %p213 = scmp.lt.s32.totalorder %s212, 15
        %s214 = scalar_select %p213, %s212, 15
        %s215 = scalar_lea.vmem %s1, %s214
        %s216 = smul.u32 8, %s18
        %v217 = vld [vmem:[%s210] sm:$0xff]
        %v218 = vld [vmem:[%s210 + $0x8] sm:$0xff]
        %v219 = vld [vmem:[%s210 + $0x10] sm:$0xff]
        %v220 = vld [vmem:[%s210 + $0x18] sm:$0xff]
        %v221 = vld [vmem:[%s210 + $0x20] sm:$0xff]
        %v222 = vld [vmem:[%s210 + $0x28] sm:$0xff]
        %v223 = vld [vmem:[%s210 + $0x30] sm:$0xff]
        %v224 = vld [vmem:[%s210 + $0x38] sm:$0xff]
        %v225 = vld [vmem:[%s215] sm:$0x1]
        %v226 = vld [vmem:[%s215 + $0x1] sm:$0x1]
        %v227 = vld [vmem:[%s215 + $0x2] sm:$0x1]
        %v228 = vld [vmem:[%s215 + $0x3] sm:$0x1]
        %v229 = vld [vmem:[%s215 + $0x4] sm:$0x1]
        %v230 = vld [vmem:[%s215 + $0x5] sm:$0x1]
        %v231 = vld [vmem:[%s215 + $0x6] sm:$0x1]
        %v232 = vld [vmem:[%s215 + $0x7] sm:$0x1]
        %v241 = vlaneseq
        %v242 = vshrl.u32 %v241, 7
        %v243 = vsub.s32 0, %v242
        %v244 = vrot.slane %v225, %v243
        %v245 = vlaneseq
        %v246 = vshrl.u32 %v245, 7
        %v247 = vsub.s32 0, %v246
        %v248 = vrot.slane %v226, %v247
        %v249 = vlaneseq
        %v250 = vshrl.u32 %v249, 7
        %v251 = vsub.s32 0, %v250
        %v252 = vrot.slane %v227, %v251
        %v253 = vlaneseq
        %v254 = vshrl.u32 %v253, 7
        %v255 = vsub.s32 0, %v254
        %v256 = vrot.slane %v228, %v255
        %v257 = vlaneseq
        %v258 = vshrl.u32 %v257, 7
        %v259 = vsub.s32 0, %v258
        %v260 = vrot.slane %v229, %v259
        %v261 = vlaneseq
        %v262 = vshrl.u32 %v261, 7
        %v263 = vsub.s32 0, %v262
        %v264 = vrot.slane %v230, %v263
        %v265 = vlaneseq
        %v266 = vshrl.u32 %v265, 7
        %v267 = vsub.s32 0, %v266
        %v268 = vrot.slane %v231, %v267
        %v269 = vlaneseq
        %v270 = vshrl.u32 %v269, 7
        %v271 = vsub.s32 0, %v270
        %v272 = vrot.slane %v232, %v271
        %v281 = vmul.f32 %v217, %v244
        %v282 = vmul.f32 %v218, %v248
        %v283 = vmul.f32 %v219, %v252
        %v284 = vmul.f32 %v220, %v256
        %v285 = vmul.f32 %v221, %v260
        %v286 = vmul.f32 %v222, %v264
        %v287 = vmul.f32 %v223, %v268
        %v288 = vmul.f32 %v224, %v272
        %vm289 = vcmask 31744
        %v290 = vsel %vm289, %v281, 0.0
        %291 = vadd.xlane.f32.xlu0 %v290
        %v292 = vpop.xlane.xlu0 %291
        %v293 = vsel %vm289, %v282, 0.0
        %294 = vadd.xlane.f32.xlu0 %v293
        %v295 = vpop.xlane.xlu0 %294
        %v296 = vsel %vm289, %v283, 0.0
        %297 = vadd.xlane.f32.xlu0 %v296
        %v298 = vpop.xlane.xlu0 %297
        %v299 = vsel %vm289, %v284, 0.0
        %300 = vadd.xlane.f32.xlu0 %v299
        %v301 = vpop.xlane.xlu0 %300
        %v302 = vsel %vm289, %v285, 0.0
        %303 = vadd.xlane.f32.xlu0 %v302
        %v304 = vpop.xlane.xlu0 %303
        %v305 = vsel %vm289, %v286, 0.0
        %306 = vadd.xlane.f32.xlu0 %v305
        %v307 = vpop.xlane.xlu0 %306
        %v308 = vsel %vm289, %v287, 0.0
        %309 = vadd.xlane.f32.xlu0 %v308
        %v310 = vpop.xlane.xlu0 %309
        %v311 = vsel %vm289, %v288, 0.0
        %312 = vadd.xlane.f32.xlu0 %v311
        %v313 = vpop.xlane.xlu0 %312
        %v314 = vld [vmem:[%s2] sm:$0xff]
        %v315 = vld [vmem:[%s2 + $0x8] sm:$0xff]
        %v316 = vld [vmem:[%s3] sm:$0x3]
        %v318 = vlaneseq
        %v319 = vshrl.u32 %v318, 7
        %v320 = vsub.s32 0, %v319
        %v321 = vrot.slane %v316, %v320
        %v322 = vlaneseq
        %v323 = vshrl.u32 %v322, 7
        %v324 = vsub.s32 1, %v323
        %v325 = vrot.slane %v316, %v324
        %v336 = vlaneseq
        %v337 = vand.u32 %v336, 127
        %v338 = vlaneseq
        %v339 = vshrl.u32 %v338, 7
        %v340 = vsub.s32 %v337, %v339
        %v341 = vrot.slane %v292, %v340
        %v342 = vlaneseq
        %v343 = vshrl.u32 %v342, 7
        %v344 = vsub.s32 %v337, %v343
        %v345 = vrot.slane %v295, %v344
        %v346 = vlaneseq
        %v347 = vshrl.u32 %v346, 7
        %v348 = vsub.s32 %v337, %v347
        %v349 = vrot.slane %v298, %v348
        %v350 = vlaneseq
        %v351 = vshrl.u32 %v350, 7
        %v352 = vsub.s32 %v337, %v351
        %v353 = vrot.slane %v301, %v352
        %v354 = vlaneseq
        %v355 = vshrl.u32 %v354, 7
        %v356 = vsub.s32 %v337, %v355
        %v357 = vrot.slane %v304, %v356
        %v358 = vlaneseq
        %v359 = vshrl.u32 %v358, 7
        %v360 = vsub.s32 %v337, %v359
        %v361 = vrot.slane %v307, %v360
        %v362 = vlaneseq
        %v363 = vshrl.u32 %v362, 7
        %v364 = vsub.s32 %v337, %v363
        %v365 = vrot.slane %v310, %v364
        %v366 = vlaneseq
        %v367 = vshrl.u32 %v366, 7
        %v368 = vsub.s32 %v337, %v367
        %v369 = vrot.slane %v313, %v368
        %vm370 = vcmask 1041409
        %v371 = vsel %vm370, %v345, %v341
        %vm372 = vcmask 1042434
        %v373 = vsel %vm372, %v349, %v371
        %vm374 = vcmask 1043459
        %v375 = vsel %vm374, %v353, %v373
        %vm376 = vcmask 1044484
        %v377 = vsel %vm376, %v357, %v375
        %vm378 = vcmask 1045509
        %v379 = vsel %vm378, %v361, %v377
        %vm380 = vcmask 1046534
        %v381 = vsel %vm380, %v365, %v379
        %vm382 = vcmask 1047559
        %v383 = vsel %vm382, %v369, %v381
        %vm384 = vcmask 64512
        %v385 = vsel %vm384, %v383, 0
        %387 = vmatprep.subr.mxu0 0.0
        %388 = vmatpush1.msra.mxu0 0.0
        %389 = vmatprep.subr.mxu0 0.0
        %390 = vmatpush1.msra.mxu0 0.0
        %391 = vmatprep.subr.mxu0 0.0
        %392 = vmatpush1.msra.mxu0 0.0
        %393 = vmatprep.subr.mxu0 0.0
        %394 = vmatpush1.msra.mxu0 0.0
        %395 = vmatprep.subr.mxu0 0.0
        %396 = vmatpush1.msra.mxu0 0.0
        %397 = vmatprep.subr.mxu0 0.0
        %398 = vmatpush1.msra.mxu0 0.0
        %399 = vmatprep.subr.mxu0 0.0
        %400 = vmatpush1.msra.mxu0 0.0
        %401 = vmatprep.subr.mxu0 0.0
        %402 = vmatpush1.msra.mxu0 0.0
        %403 = vmatprep.subr.mxu0 0.0
        %404 = vmatpush1.msra.mxu0 0.0
        %405 = vmatprep.subr.mxu0 0.0
        %406 = vmatpush1.msra.mxu0 0.0
        %407 = vmatprep.subr.mxu0 0.0
        %408 = vmatpush1.msra.mxu0 0.0
        %409 = vmatprep.subr.mxu0 0.0
        %410 = vmatpush1.msra.mxu0 0.0
        %411 = vmatprep.subr.mxu0 0.0
        %412 = vmatpush1.msra.mxu0 0.0
        %413 = vmatprep.subr.mxu0 0.0
        %414 = vmatpush1.msra.mxu0 0.0
        %415 = vmatprep.subr.mxu0 0.0
        %416 = vmatpush1.msra.mxu0 0.0
        %v417 = vand.u32 %v315, 4294901760
        %418 = vmatprep.subr.mxu0 %v417
        %v419 = vand.u32 %v314, 4294901760
        %420 = vmatpush1.msra.mxu0 %v419
        %421 = vmatprep.subr.mxu0 0.0
        %422 = vmatpush2.msra.mxu0 0.0
        %423 = vmatprep.subr.mxu0 0.0
        %424 = vmatpush2.msra.mxu0 0.0
        %425 = vmatprep.subr.mxu0 0.0
        %426 = vmatpush2.msra.mxu0 0.0
        %427 = vmatprep.subr.mxu0 0.0
        %428 = vmatpush2.msra.mxu0 0.0
        %429 = vmatprep.subr.mxu0 0.0
        %430 = vmatpush2.msra.mxu0 0.0
        %431 = vmatprep.subr.mxu0 0.0
        %432 = vmatpush2.msra.mxu0 0.0
        %433 = vmatprep.subr.mxu0 0.0
        %434 = vmatpush2.msra.mxu0 0.0
        %435 = vmatprep.subr.mxu0 0.0
        %436 = vmatpush2.msra.mxu0 0.0
        %437 = vmatprep.subr.mxu0 0.0
        %438 = vmatpush2.msra.mxu0 0.0
        %439 = vmatprep.subr.mxu0 0.0
        %440 = vmatpush2.msra.mxu0 0.0
        %441 = vmatprep.subr.mxu0 0.0
        %442 = vmatpush2.msra.mxu0 0.0
        %443 = vmatprep.subr.mxu0 0.0
        %444 = vmatpush2.msra.mxu0 0.0
        %445 = vmatprep.subr.mxu0 0.0
        %446 = vmatpush2.msra.mxu0 0.0
        %447 = vmatprep.subr.mxu0 0.0
        %448 = vmatpush2.msra.mxu0 0.0
        %449 = vmatprep.subr.mxu0 0.0
        %450 = vmatpush2.msra.mxu0 0.0
        %451 = vmatprep.subr.mxu0 0.0
        %452 = vmatpush2.msra.mxu0 0.0
        %453 = vmatprep.mubr.f32.mxu0 0.0
        %v454 = vand.u32 %v385, 4294901760
        %v455 = vsub.f32 %v385, %v454
        %v456 = vand.u32 %v455, 4294901760
        %v457 = vsub.f32 %v455, %v456
        %v458 = vand.u32 %v457, 4294901760
        %459 = vmatmul.mubr.f32.gmra.mxu0 %v458
        %v460 = vpop.f32.mrf.mxu0
        %v461 = vadd.f32 %v321, %v460
        %v462 = vpop.f32.mrf.mxu0
        %v463 = vadd.f32 %v325, %v462
        %464 = vdwg.mxu0
        %465 = vmatprep.subr.mxu0 0.0
        %466 = vmatpush1.msra.mxu0 0.0
        %467 = vmatprep.subr.mxu0 0.0
        %468 = vmatpush1.msra.mxu0 0.0
        %469 = vmatprep.subr.mxu0 0.0
        %470 = vmatpush1.msra.mxu0 0.0
        %471 = vmatprep.subr.mxu0 0.0
        %472 = vmatpush1.msra.mxu0 0.0
        %473 = vmatprep.subr.mxu0 0.0
        %474 = vmatpush1.msra.mxu0 0.0
        %475 = vmatprep.subr.mxu0 0.0
        %476 = vmatpush1.msra.mxu0 0.0
        %477 = vmatprep.subr.mxu0 0.0
        %478 = vmatpush1.msra.mxu0 0.0
        %479 = vmatprep.subr.mxu0 0.0
        %480 = vmatpush1.msra.mxu0 0.0
        %481 = vmatprep.subr.mxu0 0.0
        %482 = vmatpush1.msra.mxu0 0.0
        %483 = vmatprep.subr.mxu0 0.0
        %484 = vmatpush1.msra.mxu0 0.0
        %485 = vmatprep.subr.mxu0 0.0
        %486 = vmatpush1.msra.mxu0 0.0
        %487 = vmatprep.subr.mxu0 0.0
        %488 = vmatpush1.msra.mxu0 0.0
        %489 = vmatprep.subr.mxu0 0.0
        %490 = vmatpush1.msra.mxu0 0.0
        %491 = vmatprep.subr.mxu0 0.0
        %492 = vmatpush1.msra.mxu0 0.0
        %493 = vmatprep.subr.mxu0 0.0
        %494 = vmatpush1.msra.mxu0 0.0
        %v495 = vand.u32 %v315, 4294901760
        %v496 = vsub.f32 %v315, %v495
        %v497 = vand.u32 %v496, 4294901760
        %v498 = vsub.f32 %v496, %v497
        %v499 = vand.u32 %v498, 4294901760
        %500 = vmatprep.subr.mxu0 %v499
        %v501 = vand.u32 %v314, 4294901760
        %v502 = vsub.f32 %v314, %v501
        %v503 = vand.u32 %v502, 4294901760
        %v504 = vsub.f32 %v502, %v503
        %v505 = vand.u32 %v504, 4294901760
        %506 = vmatpush1.msra.mxu0 %v505
        %507 = vmatprep.subr.mxu0 0.0
        %508 = vmatpush2.msra.mxu0 0.0
        %509 = vmatprep.subr.mxu0 0.0
        %510 = vmatpush2.msra.mxu0 0.0
        %511 = vmatprep.subr.mxu0 0.0
        %512 = vmatpush2.msra.mxu0 0.0
        %513 = vmatprep.subr.mxu0 0.0
        %514 = vmatpush2.msra.mxu0 0.0
        %515 = vmatprep.subr.mxu0 0.0
        %516 = vmatpush2.msra.mxu0 0.0
        %517 = vmatprep.subr.mxu0 0.0
        %518 = vmatpush2.msra.mxu0 0.0
        %519 = vmatprep.subr.mxu0 0.0
        %520 = vmatpush2.msra.mxu0 0.0
        %521 = vmatprep.subr.mxu0 0.0
        %522 = vmatpush2.msra.mxu0 0.0
        %523 = vmatprep.subr.mxu0 0.0
        %524 = vmatpush2.msra.mxu0 0.0
        %525 = vmatprep.subr.mxu0 0.0
        %526 = vmatpush2.msra.mxu0 0.0
        %527 = vmatprep.subr.mxu0 0.0
        %528 = vmatpush2.msra.mxu0 0.0
        %529 = vmatprep.subr.mxu0 0.0
        %530 = vmatpush2.msra.mxu0 0.0
        %531 = vmatprep.subr.mxu0 0.0
        %532 = vmatpush2.msra.mxu0 0.0
        %533 = vmatprep.subr.mxu0 0.0
        %534 = vmatpush2.msra.mxu0 0.0
        %535 = vmatprep.subr.mxu0 0.0
        %536 = vmatpush2.msra.mxu0 0.0
        %537 = vmatprep.subr.mxu0 0.0
        %538 = vmatpush2.msra.mxu0 0.0
        %539 = vmatprep.mubr.f32.mxu0 0.0
        %v540 = vand.u32 %v385, 4294901760
        %541 = vmatmul.mubr.f32.gmra.mxu0 %v540
        %v542 = vpop.f32.mrf.mxu0
        %v543 = vadd.f32 %v461, %v542
        %v544 = vpop.f32.mrf.mxu0
        %v545 = vadd.f32 %v463, %v544
        %546 = vdwg.mxu0
        %547 = vmatprep.subr.mxu0 0.0
        %548 = vmatpush1.msra.mxu0 0.0
        %549 = vmatprep.subr.mxu0 0.0
        %550 = vmatpush1.msra.mxu0 0.0
        %551 = vmatprep.subr.mxu0 0.0
        %552 = vmatpush1.msra.mxu0 0.0
        %553 = vmatprep.subr.mxu0 0.0
        %554 = vmatpush1.msra.mxu0 0.0
        %555 = vmatprep.subr.mxu0 0.0
        %556 = vmatpush1.msra.mxu0 0.0
        %557 = vmatprep.subr.mxu0 0.0
        %558 = vmatpush1.msra.mxu0 0.0
        %559 = vmatprep.subr.mxu0 0.0
        %560 = vmatpush1.msra.mxu0 0.0
        %561 = vmatprep.subr.mxu0 0.0
        %562 = vmatpush1.msra.mxu0 0.0
        %563 = vmatprep.subr.mxu0 0.0
        %564 = vmatpush1.msra.mxu0 0.0
        %565 = vmatprep.subr.mxu0 0.0
        %566 = vmatpush1.msra.mxu0 0.0
        %567 = vmatprep.subr.mxu0 0.0
        %568 = vmatpush1.msra.mxu0 0.0
        %569 = vmatprep.subr.mxu0 0.0
        %570 = vmatpush1.msra.mxu0 0.0
        %571 = vmatprep.subr.mxu0 0.0
        %572 = vmatpush1.msra.mxu0 0.0
        %573 = vmatprep.subr.mxu0 0.0
        %574 = vmatpush1.msra.mxu0 0.0
        %575 = vmatprep.subr.mxu0 0.0
        %576 = vmatpush1.msra.mxu0 0.0
        %v577 = vand.u32 %v315, 4294901760
        %v578 = vsub.f32 %v315, %v577
        %579 = vmatprep.subr.mxu0 %v578
        %v580 = vand.u32 %v314, 4294901760
        %v581 = vsub.f32 %v314, %v580
        %582 = vmatpush1.msra.mxu0 %v581
        %583 = vmatprep.subr.mxu0 0.0
        %584 = vmatpush2.msra.mxu0 0.0
        %585 = vmatprep.subr.mxu0 0.0
        %586 = vmatpush2.msra.mxu0 0.0
        %587 = vmatprep.subr.mxu0 0.0
        %588 = vmatpush2.msra.mxu0 0.0
        %589 = vmatprep.subr.mxu0 0.0
        %590 = vmatpush2.msra.mxu0 0.0
        %591 = vmatprep.subr.mxu0 0.0
        %592 = vmatpush2.msra.mxu0 0.0
        %593 = vmatprep.subr.mxu0 0.0
        %594 = vmatpush2.msra.mxu0 0.0
        %595 = vmatprep.subr.mxu0 0.0
        %596 = vmatpush2.msra.mxu0 0.0
        %597 = vmatprep.subr.mxu0 0.0
        %598 = vmatpush2.msra.mxu0 0.0
        %599 = vmatprep.subr.mxu0 0.0
        %600 = vmatpush2.msra.mxu0 0.0
        %601 = vmatprep.subr.mxu0 0.0
        %602 = vmatpush2.msra.mxu0 0.0
        %603 = vmatprep.subr.mxu0 0.0
        %604 = vmatpush2.msra.mxu0 0.0
        %605 = vmatprep.subr.mxu0 0.0
        %606 = vmatpush2.msra.mxu0 0.0
        %607 = vmatprep.subr.mxu0 0.0
        %608 = vmatpush2.msra.mxu0 0.0
        %609 = vmatprep.subr.mxu0 0.0
        %610 = vmatpush2.msra.mxu0 0.0
        %611 = vmatprep.subr.mxu0 0.0
        %612 = vmatpush2.msra.mxu0 0.0
        %613 = vmatprep.subr.mxu0 0.0
        %614 = vmatpush2.msra.mxu0 0.0
        %615 = vmatprep.mubr.f32.mxu0 0.0
        %v616 = vand.u32 %v385, 4294901760
        %v617 = vsub.f32 %v385, %v616
        %618 = vmatmul.mubr.f32.gmra.mxu0 %v617
        %v619 = vpop.f32.mrf.mxu0
        %v620 = vadd.f32 %v543, %v619
        %v621 = vpop.f32.mrf.mxu0
        %v622 = vadd.f32 %v545, %v621
        %623 = vdwg.mxu0
        %624 = vmatprep.subr.mxu0 0.0
        %625 = vmatpush1.msra.mxu0 0.0
        %626 = vmatprep.subr.mxu0 0.0
        %627 = vmatpush1.msra.mxu0 0.0
        %628 = vmatprep.subr.mxu0 0.0
        %629 = vmatpush1.msra.mxu0 0.0
        %630 = vmatprep.subr.mxu0 0.0
        %631 = vmatpush1.msra.mxu0 0.0
        %632 = vmatprep.subr.mxu0 0.0
        %633 = vmatpush1.msra.mxu0 0.0
        %634 = vmatprep.subr.mxu0 0.0
        %635 = vmatpush1.msra.mxu0 0.0
        %636 = vmatprep.subr.mxu0 0.0
        %637 = vmatpush1.msra.mxu0 0.0
        %638 = vmatprep.subr.mxu0 0.0
        %639 = vmatpush1.msra.mxu0 0.0
        %640 = vmatprep.subr.mxu0 0.0
        %641 = vmatpush1.msra.mxu0 0.0
        %642 = vmatprep.subr.mxu0 0.0
        %643 = vmatpush1.msra.mxu0 0.0
        %644 = vmatprep.subr.mxu0 0.0
        %645 = vmatpush1.msra.mxu0 0.0
        %646 = vmatprep.subr.mxu0 0.0
        %647 = vmatpush1.msra.mxu0 0.0
        %648 = vmatprep.subr.mxu0 0.0
        %649 = vmatpush1.msra.mxu0 0.0
        %650 = vmatprep.subr.mxu0 0.0
        %651 = vmatpush1.msra.mxu0 0.0
        %652 = vmatprep.subr.mxu0 0.0
        %653 = vmatpush1.msra.mxu0 0.0
        %v654 = vand.u32 %v315, 4294901760
        %655 = vmatprep.subr.mxu0 %v654
        %v656 = vand.u32 %v314, 4294901760
        %657 = vmatpush1.msra.mxu0 %v656
        %658 = vmatprep.subr.mxu0 0.0
        %659 = vmatpush2.msra.mxu0 0.0
        %660 = vmatprep.subr.mxu0 0.0
        %661 = vmatpush2.msra.mxu0 0.0
        %662 = vmatprep.subr.mxu0 0.0
        %663 = vmatpush2.msra.mxu0 0.0
        %664 = vmatprep.subr.mxu0 0.0
        %665 = vmatpush2.msra.mxu0 0.0
        %666 = vmatprep.subr.mxu0 0.0
        %667 = vmatpush2.msra.mxu0 0.0
        %668 = vmatprep.subr.mxu0 0.0
        %669 = vmatpush2.msra.mxu0 0.0
        %670 = vmatprep.subr.mxu0 0.0
        %671 = vmatpush2.msra.mxu0 0.0
        %672 = vmatprep.subr.mxu0 0.0
        %673 = vmatpush2.msra.mxu0 0.0
        %674 = vmatprep.subr.mxu0 0.0
        %675 = vmatpush2.msra.mxu0 0.0
        %676 = vmatprep.subr.mxu0 0.0
        %677 = vmatpush2.msra.mxu0 0.0
        %678 = vmatprep.subr.mxu0 0.0
        %679 = vmatpush2.msra.mxu0 0.0
        %680 = vmatprep.subr.mxu0 0.0
        %681 = vmatpush2.msra.mxu0 0.0
        %682 = vmatprep.subr.mxu0 0.0
        %683 = vmatpush2.msra.mxu0 0.0
        %684 = vmatprep.subr.mxu0 0.0
        %685 = vmatpush2.msra.mxu0 0.0
        %686 = vmatprep.subr.mxu0 0.0
        %687 = vmatpush2.msra.mxu0 0.0
        %688 = vmatprep.subr.mxu0 0.0
        %689 = vmatpush2.msra.mxu0 0.0
        %690 = vmatprep.mubr.f32.mxu0 0.0
        %v691 = vand.u32 %v385, 4294901760
        %v692 = vsub.f32 %v385, %v691
        %v693 = vand.u32 %v692, 4294901760
        %694 = vmatmul.mubr.f32.gmra.mxu0 %v693
        %v695 = vpop.f32.mrf.mxu0
        %v696 = vadd.f32 %v620, %v695
        %v697 = vpop.f32.mrf.mxu0
        %v698 = vadd.f32 %v622, %v697
        %699 = vdwg.mxu0
        %700 = vmatprep.subr.mxu0 0.0
        %701 = vmatpush1.msra.mxu0 0.0
        %702 = vmatprep.subr.mxu0 0.0
        %703 = vmatpush1.msra.mxu0 0.0
        %704 = vmatprep.subr.mxu0 0.0
        %705 = vmatpush1.msra.mxu0 0.0
        %706 = vmatprep.subr.mxu0 0.0
        %707 = vmatpush1.msra.mxu0 0.0
        %708 = vmatprep.subr.mxu0 0.0
        %709 = vmatpush1.msra.mxu0 0.0
        %710 = vmatprep.subr.mxu0 0.0
        %711 = vmatpush1.msra.mxu0 0.0
        %712 = vmatprep.subr.mxu0 0.0
        %713 = vmatpush1.msra.mxu0 0.0
        %714 = vmatprep.subr.mxu0 0.0
        %715 = vmatpush1.msra.mxu0 0.0
        %716 = vmatprep.subr.mxu0 0.0
        %717 = vmatpush1.msra.mxu0 0.0
        %718 = vmatprep.subr.mxu0 0.0
        %719 = vmatpush1.msra.mxu0 0.0
        %720 = vmatprep.subr.mxu0 0.0
        %721 = vmatpush1.msra.mxu0 0.0
        %722 = vmatprep.subr.mxu0 0.0
        %723 = vmatpush1.msra.mxu0 0.0
        %724 = vmatprep.subr.mxu0 0.0
        %725 = vmatpush1.msra.mxu0 0.0
        %726 = vmatprep.subr.mxu0 0.0
        %727 = vmatpush1.msra.mxu0 0.0
        %728 = vmatprep.subr.mxu0 0.0
        %729 = vmatpush1.msra.mxu0 0.0
        %v730 = vand.u32 %v315, 4294901760
        %v731 = vsub.f32 %v315, %v730
        %v732 = vand.u32 %v731, 4294901760
        %733 = vmatprep.subr.mxu0 %v732
        %v734 = vand.u32 %v314, 4294901760
        %v735 = vsub.f32 %v314, %v734
        %v736 = vand.u32 %v735, 4294901760
        %737 = vmatpush1.msra.mxu0 %v736
        %738 = vmatprep.subr.mxu0 0.0
        %739 = vmatpush2.msra.mxu0 0.0
        %740 = vmatprep.subr.mxu0 0.0
        %741 = vmatpush2.msra.mxu0 0.0
        %742 = vmatprep.subr.mxu0 0.0
        %743 = vmatpush2.msra.mxu0 0.0
        %744 = vmatprep.subr.mxu0 0.0
        %745 = vmatpush2.msra.mxu0 0.0
        %746 = vmatprep.subr.mxu0 0.0
        %747 = vmatpush2.msra.mxu0 0.0
        %748 = vmatprep.subr.mxu0 0.0
        %749 = vmatpush2.msra.mxu0 0.0
        %750 = vmatprep.subr.mxu0 0.0
        %751 = vmatpush2.msra.mxu0 0.0
        %752 = vmatprep.subr.mxu0 0.0
        %753 = vmatpush2.msra.mxu0 0.0
        %754 = vmatprep.subr.mxu0 0.0
        %755 = vmatpush2.msra.mxu0 0.0
        %756 = vmatprep.subr.mxu0 0.0
        %757 = vmatpush2.msra.mxu0 0.0
        %758 = vmatprep.subr.mxu0 0.0
        %759 = vmatpush2.msra.mxu0 0.0
        %760 = vmatprep.subr.mxu0 0.0
        %761 = vmatpush2.msra.mxu0 0.0
        %762 = vmatprep.subr.mxu0 0.0
        %763 = vmatpush2.msra.mxu0 0.0
        %764 = vmatprep.subr.mxu0 0.0
        %765 = vmatpush2.msra.mxu0 0.0
        %766 = vmatprep.subr.mxu0 0.0
        %767 = vmatpush2.msra.mxu0 0.0
        %768 = vmatprep.subr.mxu0 0.0
        %769 = vmatpush2.msra.mxu0 0.0
        %770 = vmatprep.mubr.f32.mxu0 0.0
        %v771 = vand.u32 %v385, 4294901760
        %772 = vmatmul.mubr.f32.gmra.mxu0 %v771
        %v773 = vpop.f32.mrf.mxu0
        %v774 = vadd.f32 %v696, %v773
        %v775 = vpop.f32.mrf.mxu0
        %v776 = vadd.f32 %v698, %v775
        %777 = vdwg.mxu0
        %778 = vmatprep.subr.mxu0 0.0
        %779 = vmatpush1.msra.mxu0 0.0
        %780 = vmatprep.subr.mxu0 0.0
        %781 = vmatpush1.msra.mxu0 0.0
        %782 = vmatprep.subr.mxu0 0.0
        %783 = vmatpush1.msra.mxu0 0.0
        %784 = vmatprep.subr.mxu0 0.0
        %785 = vmatpush1.msra.mxu0 0.0
        %786 = vmatprep.subr.mxu0 0.0
        %787 = vmatpush1.msra.mxu0 0.0
        %788 = vmatprep.subr.mxu0 0.0
        %789 = vmatpush1.msra.mxu0 0.0
        %790 = vmatprep.subr.mxu0 0.0
        %791 = vmatpush1.msra.mxu0 0.0
        %792 = vmatprep.subr.mxu0 0.0
        %793 = vmatpush1.msra.mxu0 0.0
        %794 = vmatprep.subr.mxu0 0.0
        %795 = vmatpush1.msra.mxu0 0.0
        %796 = vmatprep.subr.mxu0 0.0
        %797 = vmatpush1.msra.mxu0 0.0
        %798 = vmatprep.subr.mxu0 0.0
        %799 = vmatpush1.msra.mxu0 0.0
        %800 = vmatprep.subr.mxu0 0.0
        %801 = vmatpush1.msra.mxu0 0.0
        %802 = vmatprep.subr.mxu0 0.0
        %803 = vmatpush1.msra.mxu0 0.0
        %804 = vmatprep.subr.mxu0 0.0
        %805 = vmatpush1.msra.mxu0 0.0
        %806 = vmatprep.subr.mxu0 0.0
        %807 = vmatpush1.msra.mxu0 0.0
        %v808 = vand.u32 %v315, 4294901760
        %809 = vmatprep.subr.mxu0 %v808
        %v810 = vand.u32 %v314, 4294901760
        %811 = vmatpush1.msra.mxu0 %v810
        %812 = vmatprep.subr.mxu0 0.0
        %813 = vmatpush2.msra.mxu0 0.0
        %814 = vmatprep.subr.mxu0 0.0
        %815 = vmatpush2.msra.mxu0 0.0
        %816 = vmatprep.subr.mxu0 0.0
        %817 = vmatpush2.msra.mxu0 0.0
        %818 = vmatprep.subr.mxu0 0.0
        %819 = vmatpush2.msra.mxu0 0.0
        %820 = vmatprep.subr.mxu0 0.0
        %821 = vmatpush2.msra.mxu0 0.0
        %822 = vmatprep.subr.mxu0 0.0
        %823 = vmatpush2.msra.mxu0 0.0
        %824 = vmatprep.subr.mxu0 0.0
        %825 = vmatpush2.msra.mxu0 0.0
        %826 = vmatprep.subr.mxu0 0.0
        %827 = vmatpush2.msra.mxu0 0.0
        %828 = vmatprep.subr.mxu0 0.0
        %829 = vmatpush2.msra.mxu0 0.0
        %830 = vmatprep.subr.mxu0 0.0
        %831 = vmatpush2.msra.mxu0 0.0
        %832 = vmatprep.subr.mxu0 0.0
        %833 = vmatpush2.msra.mxu0 0.0
        %834 = vmatprep.subr.mxu0 0.0
        %835 = vmatpush2.msra.mxu0 0.0
        %836 = vmatprep.subr.mxu0 0.0
        %837 = vmatpush2.msra.mxu0 0.0
        %838 = vmatprep.subr.mxu0 0.0
        %839 = vmatpush2.msra.mxu0 0.0
        %840 = vmatprep.subr.mxu0 0.0
        %841 = vmatpush2.msra.mxu0 0.0
        %842 = vmatprep.subr.mxu0 0.0
        %843 = vmatpush2.msra.mxu0 0.0
        %844 = vmatprep.mubr.f32.mxu0 0.0
        %v845 = vand.u32 %v385, 4294901760
        %846 = vmatmul.mubr.f32.gmra.mxu0 %v845
        %v847 = vpop.f32.mrf.mxu0
        %v848 = vadd.f32 %v774, %v847
        %v849 = vpop.f32.mrf.mxu0
        %v850 = vadd.f32 %v776, %v849
        %851 = vdwg.mxu0
        %852 = vst [vmem:[%s205] sm:$0xff] %v848
        %853 = vst [vmem:[%s205 + $0x8] sm:$0xff] %v850
        %s854 = sand.u32 %s120, 1
        %s855 = scalar_lea.sflag [#allocation3], %s854
        %s856 = sand.u32 %s120, 1
        %s857 = smul.addr %s856, 16
        %s858 = scalar_lea.vmem [#allocation2], %s857
        // Predicated region
        $region37: #{tpu_custom_call.1} parent=35 // pred_check
          %p859 = pneg %p130
        $region38: #{tpu_custom_call.1} parent=35 // pred_check_branch
          %861 = sbr.rel (%p859) target = $region40
        $region39: #{tpu_custom_call.1} parent=35 // pred_region
          %s863 = ssub.s32 256, 256
          %864 = vsyncadd %s855, %s863
          %s865 = smul.addr %s18, 2
          %s866 = smul.addr %s865, 128
          %s867 = scalar_lea.hbm %s4, %s866
          %s869 = sshll.u32 %s858, 4
          %s870 = int_to_ptr.vmem [resolvable:$true] %s869
          %872 = dma.vmem_to_hbm [thread:$0]  %s870, 256, %s867, %s855
        $region40: #{tpu_custom_call.1} parent=35 // pred_fallthru
          _
      $region36: #{tpu_custom_call.1} parent=5 // pred_fallthru
        _
      %p873 = scmp.le.s32.totalorder 2, %s13
      // Predicated region
      $region41: #{tpu_custom_call.1} parent=5 // pred_check
        %p874 = pneg %p873
      $region42: #{tpu_custom_call.1} parent=5 // pred_check_branch
        %876 = sbr.rel (%p874) target = $region44
      $region43: #{tpu_custom_call.1} parent=5 // pred_region
        %s877 = ssub.s32 %s13, 2
        // Predicated region
        $region45: #{tpu_custom_call.1} parent=43 // pred_check
          %p878 = pneg %p136
        $region46: #{tpu_custom_call.1} parent=43 // pred_check_branch
          %880 = sbr.rel (%p878) target = $region48
        $region47: #{tpu_custom_call.1} parent=43 // pred_region
          %s881 = sand.u32 %s121, 1
          %s882 = scalar_lea.sflag [#allocation3], %s881
          %s883 = sand.u32 %s121, 1
          %s884 = smul.addr %s883, 16
          %s885 = scalar_lea.vmem [#allocation2], %s884
          %886 = dma.done %s882, 256
        $region48: #{tpu_custom_call.1} parent=43 // pred_fallthru
          _
      $region44: #{tpu_custom_call.1} parent=5 // pred_fallthru
        _
    $region6: #{tpu_custom_call.1} parent=1 // loop_footer
      %s17 = sadd.s32 1, %s13
    $region7: #{tpu_custom_call.1} parent=1 // loop_footer_branch
      %12 = sbr.rel target = $region3
    $region8: #{tpu_custom_call.1} parent=1 // loop_exit
      _
    %887 = vsyncpa [#allocation3], 1
    %s888 = scalar_lea.sflag [#allocation3], 1
    %889 = vsyncpa %s888, 1

</llo_original>
